<compile_context>
chip_gen: v5e
topology: v5e:2x2
jax: 0.10.0
libtpu: 0.0.40
codegen_flags: <defaults>
</compile_context>

<pallas_src>
import functools

import jax
import jax.numpy as jnp
from jax.experimental import pallas as pl
from jax.experimental.pallas import tpu as pltpu


_N_SDF_PARAMS = {"sphere": 1, "box": 3, "torus": 2}


def _round_up(x, m):
    return ((x + m - 1) // m) * m


def _sdf_volume_kernel(scal_ref, pts_ref, invd_ref, dens_ref, *feat_refs,
                       sdf_type, rainbow):
    """One (row_tile, 128) slab of points: SDF -> density -> -log(1-density)*inv_delta."""
    # Packed scalars in SMEM: [cx, cy, cz, <sdf params>, alpha, inv_beta, (feature...)]
    cx, cy, cz = scal_ref[0], scal_ref[1], scal_ref[2]
    n_sdf = _N_SDF_PARAMS[sdf_type]
    alpha = scal_ref[3 + n_sdf]
    inv_beta = scal_ref[3 + n_sdf + 1]
    feat_off = 3 + n_sdf + 2

    dx = pts_ref[0] - cx                       # (row_tile, 128), fully dense vregs
    dy = pts_ref[1] - cy
    dz = pts_ref[2] - cz

    if sdf_type == "sphere":
        radius = scal_ref[3]
        sd = jnp.sqrt(dx * dx + dy * dy + dz * dz) - radius
    elif sdf_type == "box":
        qx = jnp.abs(dx) - scal_ref[3] * 0.5
        qy = jnp.abs(dy) - scal_ref[4] * 0.5
        qz = jnp.abs(dz) - scal_ref[5] * 0.5
        ox = jnp.maximum(qx, 0.0)
        oy = jnp.maximum(qy, 0.0)
        oz = jnp.maximum(qz, 0.0)
        sd = (jnp.sqrt(ox * ox + oy * oy + oz * oz)
              + jnp.minimum(jnp.maximum(jnp.maximum(qx, qy), qz), 0.0))
    elif sdf_type == "torus":
        r0 = scal_ref[3]
        r1 = scal_ref[4]
        qx = jnp.sqrt(dx * dx + dy * dy) - r0
        sd = jnp.sqrt(qx * qx + dz * dz) - r1
    else:
        raise ValueError(f"unknown sdf type: {sdf_type}")

    # _sdf_to_density with a single EUP exp per point (argument always <= 0,
    # so no overflow in either branch of the select).
    e = jnp.exp(-jnp.abs(sd) * inv_beta)
    density = jnp.where(sd > 0.0, 0.5 * e, 1.0 - 0.5 * e) * alpha

    dens_ref[...] = (-jnp.log(1.0 - density)) * invd_ref[...]

    if rainbow:
        feat_ref = feat_refs[0]                # (3, row_tile, 128)
        feat_ref[0, :, :] = jnp.clip(jnp.abs(dx), 0.02, 0.98) * scal_ref[feat_off + 0]
        feat_ref[1, :, :] = jnp.clip(jnp.abs(dy), 0.02, 0.98) * scal_ref[feat_off + 1]
        feat_ref[2, :, :] = jnp.clip(jnp.abs(dz), 0.02, 0.98) * scal_ref[feat_off + 2]


def sdf_volume_forward(sample_points, sample_lengths, params, *,
                       sdf_type="sphere", rainbow=False, max_row_tile=512):
    """Pallas implementation of SDFVolume.forward.

    sample_points:  (n_rays, n_samples, 3)
    sample_lengths: (n_rays, n_samples, L) -- only [..., 0] (depth values) is used
    params: dict with 'center', 'alpha', 'beta', 'feature' and the SDF-specific
            parameter ('radius' | 'side_lengths' | 'radii').
    Returns {"density": (N, 1), "feature": (N, F)}, N = n_rays * n_samples.
    """
    n_rays, n_samples = sample_points.shape[0], sample_points.shape[1]
    N = n_rays * n_samples

    feature = jnp.asarray(params["feature"], jnp.float32).reshape(-1)
    feat_dim = feature.shape[0]
    if rainbow:
        assert feat_dim == 3, "rainbow base_color requires a 3-channel feature"

    # deltas exactly as in the PyTorch forward (per-ray shifted difference, 1e10
    # at the last sample); reciprocal fused here so the kernel only multiplies.
    depth = sample_lengths[..., 0].astype(jnp.float32)          # (n_rays, n_samples)
    deltas = jnp.concatenate(
        [depth[..., 1:] - depth[..., :-1],
         1e10 * jnp.ones_like(depth[..., :1])], axis=-1).reshape(N)
    inv_deltas = 1.0 / deltas                                   # exact (no approx recip)

    # Pack every scalar parameter into one small SMEM array.
    center = jnp.asarray(params["center"], jnp.float32).reshape(3)
    if sdf_type == "sphere":
        sdf_p = jnp.asarray(params["radius"], jnp.float32).reshape(1)
    elif sdf_type == "box":
        sdf_p = jnp.asarray(params["side_lengths"], jnp.float32).reshape(3)
    elif sdf_type == "torus":
        sdf_p = jnp.asarray(params["radii"], jnp.float32).reshape(2)
    else:
        raise ValueError(f"unknown sdf type: {sdf_type}")
    alpha = jnp.asarray(params["alpha"], jnp.float32).reshape(1)
    inv_beta = 1.0 / jnp.asarray(params["beta"], jnp.float32).reshape(1)
    pieces = [center, sdf_p, alpha, inv_beta]
    if rainbow:
        pieces.append(feature)
    scal = jnp.concatenate(pieces)

    # Sublane/lane-dense tiling: points mapped to (rows, 128); rows tiled in
    # multiples of 8. row_tile defaults to 512 rows = 64K points per grid step
    # (~2 MiB of streams, well under every chip's scoped-VMEM with 2x buffering).
    rows = max(1, pl.cdiv(N, 128))
    rows8 = _round_up(rows, 8)
    row_tile = min(_round_up(max(max_row_tile, 8), 8), rows8)
    # Keep >=2 grid steps when cheap, so v7x's 2 TensorCores both get work.
    if rows8 // row_tile < 2 and row_tile > 8:
        row_tile = max(8, _round_up(row_tile // 2, 8))
    rows_pad = _round_up(rows8, row_tile)
    n_pad = rows_pad * 128

    pts = sample_points.reshape(N, 3).astype(jnp.float32)
    if n_pad != N:
        # Padded points sit far outside every SDF -> density ~ 0, no NaN/Inf.
        pts = jnp.pad(pts, ((0, n_pad - N), (0, 0)), constant_values=1e6)
        inv_deltas = jnp.pad(inv_deltas, (0, n_pad - N), constant_values=1.0)
    # SoA, channel-major, points along lanes: (3, rows_pad, 128).
    # (The AoS->SoA relayout is one unavoidable pass given the RayBundle layout.)
    pts_soa = pts.T.reshape(3, rows_pad, 128)
    invd2 = inv_deltas.reshape(rows_pad, 128)

    grid = (rows_pad // row_tile,)
    kernel = functools.partial(_sdf_volume_kernel, sdf_type=sdf_type, rainbow=rainbow)

    out_shapes = [jax.ShapeDtypeStruct((rows_pad, 128), jnp.float32)]
    out_specs = [pl.BlockSpec((row_tile, 128), lambda i: (i, 0))]
    if rainbow:
        out_shapes.append(jax.ShapeDtypeStruct((3, rows_pad, 128), jnp.float32))
        out_specs.append(pl.BlockSpec((3, row_tile, 128), lambda i: (0, i, 0)))

    trans_per_pt = 4 if sdf_type == "torus" else 3       # sqrt(s) + exp + log
    bytes_per_pt = 4 * (3 + 1 + 1 + (3 if rainbow else 0))
    cost = pl.CostEstimate(
        flops=30 * n_pad,
        transcendentals=trans_per_pt * n_pad,
        bytes_accessed=bytes_per_pt * n_pad + 4 * int(scal.shape[0]),
    )

    results = pl.pallas_call(
        kernel,
        out_shape=out_shapes,
        grid=grid,
        in_specs=[
            pl.BlockSpec(memory_space=pltpu.MemorySpace.SMEM),       # packed scalars
            pl.BlockSpec((3, row_tile, 128), lambda i: (0, i, 0)),   # points, SoA dense
            pl.BlockSpec((row_tile, 128), lambda i: (i, 0)),         # 1/deltas
        ],
        out_specs=out_specs,
        compiler_params=pltpu.CompilerParams(
            dimension_semantics=("parallel",)),
        cost_estimate=cost,
    )(scal, pts_soa, invd2)

    dens = results[0]
    density = dens.reshape(n_pad)[:N].reshape(N, 1)
    if rainbow:
        # (N, 3) output layout is part of the module contract; this transpose is
        # the only remaining output relayout.
        feature_out = results[1].reshape(3, n_pad)[:, :N].T
    else:
        # Constant per-channel feature: no kernel output / HBM write needed.
        feature_out = jnp.broadcast_to(feature.reshape(1, feat_dim), (N, feat_dim))
    return {"density": density, "feature": feature_out}


def sdf_volume_reference(sample_points, sample_lengths, params, *, sdf_type, rainbow):
    """Pure-JAX reference mirroring the PyTorch SDFVolume.forward."""
    pts = sample_points.reshape(-1, 3).astype(jnp.float32)
    depth = sample_lengths[..., 0].astype(jnp.float32)
    deltas = jnp.concatenate(
        [depth[..., 1:] - depth[..., :-1],
         1e10 * jnp.ones_like(depth[..., :1])], axis=-1).reshape(-1, 1)

    center = jnp.asarray(params["center"], jnp.float32).reshape(1, 3)
    if sdf_type == "sphere":
        sd = jnp.linalg.norm(pts - center, axis=-1, keepdims=True) - params["radius"]
    elif sdf_type == "box":
        diff = jnp.abs(pts - center) - jnp.asarray(params["side_lengths"]).reshape(1, 3) / 2.0
        sd = (jnp.linalg.norm(jnp.maximum(diff, 0.0), axis=-1)
              + jnp.minimum(jnp.max(diff, axis=-1), 0.0))[:, None]
    elif sdf_type == "torus":
        diff = pts - center
        radii = jnp.asarray(params["radii"]).reshape(1, 2)
        q = jnp.stack([jnp.linalg.norm(diff[..., :2], axis=-1) - radii[..., 0],
                       diff[..., -1]], axis=-1)
        sd = (jnp.linalg.norm(q, axis=-1) - radii[..., 1])[:, None]
    else:
        raise ValueError(sdf_type)

    alpha = params["alpha"]
    beta = params["beta"]
    density = jnp.where(sd > 0,
                        0.5 * jnp.exp(-sd / beta),
                        1.0 - 0.5 * jnp.exp(sd / beta)) * alpha
    if rainbow:
        base_color = jnp.clip(jnp.abs(pts - center), 0.02, 0.98)
    else:
        base_color = 1.0
    feature = (base_color * jnp.asarray(params["feature"], jnp.float32).reshape(1, -1)
               * jnp.ones((pts.shape[0], 1), jnp.float32))
    return {"density": -jnp.log(1.0 - density) / deltas, "feature": feature}


if __name__ == "__main__":
    key = jax.random.PRNGKey(0)
    k_pts, k_len = jax.random.split(key)

    n_rays, n_samples = 64, 32                 # N = 2048 sample points
    sample_points = jax.random.normal(k_pts, (n_rays, n_samples, 3), jnp.float32)
    depth = jnp.sort(jax.random.uniform(k_len, (n_rays, n_samples), jnp.float32,
                                        0.1, 5.0), axis=-1)
    sample_lengths = depth[..., None]          # (n_rays, n_samples, 1)

    configs = [
        ("sphere", False, {"center": jnp.array([0.0, 0.0, -1.0]),
                           "radius": jnp.array(1.0)}),
        ("box", True, {"center": jnp.array([0.0, 0.0, -1.0]),
                       "side_lengths": jnp.array([1.5, 1.0, 1.0])}),
        ("torus", True, {"center": jnp.array([0.0, 0.0, -1.0]),
                         "radii": jnp.array([1.0, 0.25])}),
    ]

    for sdf_type, rainbow, sdf_params in configs:
        params = dict(sdf_params)
        params["alpha"] = jnp.array(1.0, jnp.float32)
        params["beta"] = jnp.array(0.1, jnp.float32)
        params["feature"] = jnp.ones((1, 3), jnp.float32)   # torch.ones_like(...) init

        out = sdf_volume_forward(sample_points, sample_lengths, params,
                                 sdf_type=sdf_type, rainbow=rainbow)
        out = jax.block_until_ready(out)
        ref = sdf_volume_reference(sample_points, sample_lengths, params,
                                   sdf_type=sdf_type, rainbow=rainbow)

        assert out["density"].shape == (n_rays * n_samples, 1), out["density"].shape
        assert out["feature"].shape == (n_rays * n_samples, 3), out["feature"].shape
        err_d = float(jnp.max(jnp.abs(out["density"] - ref["density"])))
        err_f = float(jnp.max(jnp.abs(out["feature"] - ref["feature"])))
        assert jnp.allclose(out["density"], ref["density"], atol=1e-4, rtol=1e-4), (sdf_type, err_d)
        assert jnp.allclose(out["feature"], ref["feature"], atol=1e-5, rtol=1e-5), (sdf_type, err_f)

    # TODO(synk): backward pass (autograd through SDF params) not implemented; forward only.
    print("KERNEL_OK")
</pallas_src>

<mosaic_0001>
module attributes {stable_mosaic.version = 11 : i64} {
  func.func @_sdf_volume_kernel(%arg0: i32, %arg1: memref<6xf32, #tpu.memory_space<smem>>, %arg2: memref<3x8x128xf32, #tpu.memory_space<vmem>>, %arg3: memref<8x128xf32, #tpu.memory_space<vmem>>, %arg4: memref<8x128xf32, #tpu.memory_space<vmem>>) attributes {dimension_semantics = [#tpu.dimension_semantics<parallel>], iteration_bounds = array<i64: 2>, scalar_prefetch = 0 : i64, scratch_operands = 0 : i64, tpu.core_type = #tpu.core_type<tc>, window_params = [{transform_indices = @transform_0, window_bounds = array<i64: 6>}, {transform_indices = @transform_1, window_bounds = array<i64: 3, 8, 128>}, {transform_indices = @transform_2, window_bounds = array<i64: 8, 128>}, {transform_indices = @transform_3, window_bounds = array<i64: 8, 128>}]} {
    %c0 = arith.constant 0 : index
    %0 = memref.load %arg1[%c0] : memref<6xf32, #tpu.memory_space<smem>>
    %c1 = arith.constant 1 : index
    %1 = memref.load %arg1[%c1] : memref<6xf32, #tpu.memory_space<smem>>
    %c2 = arith.constant 2 : index
    %2 = memref.load %arg1[%c2] : memref<6xf32, #tpu.memory_space<smem>>
    %c4 = arith.constant 4 : index
    %3 = memref.load %arg1[%c4] : memref<6xf32, #tpu.memory_space<smem>>
    %c5 = arith.constant 5 : index
    %4 = memref.load %arg1[%c5] : memref<6xf32, #tpu.memory_space<smem>>
    %c0_0 = arith.constant 0 : index
    %c0_1 = arith.constant 0 : index
    %c0_2 = arith.constant 0 : index
    %5 = vector.load %arg2[%c0_0, %c0_1, %c0_2] : memref<3x8x128xf32, #tpu.memory_space<vmem>>, vector<1x8x128xf32>
    %6 = vector.shape_cast %5 : vector<1x8x128xf32> to vector<8x128xf32>
    %7 = vector.broadcast %0 : f32 to vector<8x128xf32>
    %8 = arith.subf %6, %7 : vector<8x128xf32>
    %c1_3 = arith.constant 1 : index
    %c0_4 = arith.constant 0 : index
    %c0_5 = arith.constant 0 : index
    %9 = vector.load %arg2[%c1_3, %c0_4, %c0_5] : memref<3x8x128xf32, #tpu.memory_space<vmem>>, vector<1x8x128xf32>
    %10 = vector.shape_cast %9 : vector<1x8x128xf32> to vector<8x128xf32>
    %11 = vector.broadcast %1 : f32 to vector<8x128xf32>
    %12 = arith.subf %10, %11 : vector<8x128xf32>
    %c2_6 = arith.constant 2 : index
    %c0_7 = arith.constant 0 : index
    %c0_8 = arith.constant 0 : index
    %13 = vector.load %arg2[%c2_6, %c0_7, %c0_8] : memref<3x8x128xf32, #tpu.memory_space<vmem>>, vector<1x8x128xf32>
    %14 = vector.shape_cast %13 : vector<1x8x128xf32> to vector<8x128xf32>
    %15 = vector.broadcast %2 : f32 to vector<8x128xf32>
    %16 = arith.subf %14, %15 : vector<8x128xf32>
    %c3 = arith.constant 3 : index
    %17 = memref.load %arg1[%c3] : memref<6xf32, #tpu.memory_space<smem>>
    %18 = arith.mulf %8, %8 : vector<8x128xf32>
    %19 = arith.mulf %12, %12 : vector<8x128xf32>
    %20 = arith.addf %18, %19 : vector<8x128xf32>
    %21 = arith.mulf %16, %16 : vector<8x128xf32>
    %22 = arith.addf %20, %21 : vector<8x128xf32>
    %23 = math.sqrt %22 : vector<8x128xf32>
    %24 = vector.broadcast %17 : f32 to vector<8x128xf32>
    %25 = arith.subf %23, %24 : vector<8x128xf32>
    %26 = math.absf %25 : vector<8x128xf32>
    %cst = arith.constant 0.000000e+00 : f32
    %27 = vector.broadcast %cst : f32 to vector<8x128xf32>
    %28 = arith.subf %27, %26 : vector<8x128xf32>
    %29 = vector.broadcast %4 : f32 to vector<8x128xf32>
    %30 = arith.mulf %28, %29 : vector<8x128xf32>
    %31 = math.exp %30 : vector<8x128xf32>
    %cst_9 = arith.constant 0.000000e+00 : f32
    %32 = vector.broadcast %cst_9 : f32 to vector<8x128xf32>
    %33 = arith.cmpf ogt, %25, %32 : vector<8x128xf32>
    %cst_10 = arith.constant 5.000000e-01 : f32
    %34 = vector.broadcast %cst_10 : f32 to vector<8x128xf32>
    %35 = arith.mulf %34, %31 : vector<8x128xf32>
    %cst_11 = arith.constant 5.000000e-01 : f32
    %36 = vector.broadcast %cst_11 : f32 to vector<8x128xf32>
    %37 = arith.mulf %36, %31 : vector<8x128xf32>
    %cst_12 = arith.constant 1.000000e+00 : f32
    %38 = vector.broadcast %cst_12 : f32 to vector<8x128xf32>
    %39 = arith.subf %38, %37 : vector<8x128xf32>
    %40 = arith.select %33, %35, %39 : vector<8x128xi1>, vector<8x128xf32>
    %41 = vector.broadcast %3 : f32 to vector<8x128xf32>
    %42 = arith.mulf %40, %41 : vector<8x128xf32>
    %cst_13 = arith.constant 1.000000e+00 : f32
    %43 = vector.broadcast %cst_13 : f32 to vector<8x128xf32>
    %44 = arith.subf %43, %42 : vector<8x128xf32>
    %45 = math.log %44 : vector<8x128xf32>
    %cst_14 = arith.constant 0.000000e+00 : f32
    %46 = vector.broadcast %cst_14 : f32 to vector<8x128xf32>
    %47 = arith.subf %46, %45 : vector<8x128xf32>
    %c0_15 = arith.constant 0 : index
    %c0_16 = arith.constant 0 : index
    %48 = vector.load %arg3[%c0_15, %c0_16] : memref<8x128xf32, #tpu.memory_space<vmem>>, vector<8x128xf32>
    %49 = arith.mulf %47, %48 : vector<8x128xf32>
    %c0_17 = arith.constant 0 : index
    %c0_18 = arith.constant 0 : index
    %50 = vector.load %arg4[%c0_17, %c0_18] : memref<8x128xf32, #tpu.memory_space<vmem>>, vector<8x128xf32>
    tpu.vector_store %arg4[%c0_17, %c0_18], %49 {strides = array<i32>} : memref<8x128xf32, #tpu.memory_space<vmem>>, vector<8x128xf32>,
    return
  }
  func.func @transform_0(%arg0: i32) -> i32 {
    %c0_i32 = arith.constant 0 : i32
    %c0_i32_0 = arith.constant 0 : i32
    return %c0_i32 : i32
  }
  func.func @transform_1(%arg0: i32) -> (i32, i32, i32) {
    %c0_i32 = arith.constant 0 : i32
    %c0_i32_0 = arith.constant 0 : i32
    %c0_i32_1 = arith.constant 0 : i32
    return %c0_i32, %arg0, %c0_i32_0 : i32, i32, i32
  }
  func.func @transform_2(%arg0: i32) -> (i32, i32) {
    %c0_i32 = arith.constant 0 : i32
    %c0_i32_0 = arith.constant 0 : i32
    return %arg0, %c0_i32 : i32, i32
  }
  func.func @transform_3(%arg0: i32) -> (i32, i32) {
    %c0_i32 = arith.constant 0 : i32
    %c0_i32_0 = arith.constant 0 : i32
    return %arg0, %c0_i32 : i32, i32
  }
}

</mosaic_0001>

<llo_original>
// kernel: tpu_custom_call.1
$region0: #{tpu_custom_call.1}
  #allocation0 [shape = 'u32[]', space=smem, size = 0x4, offset = 0x4, fixed_abs, tag = 'smem constant byte address 0x4 - core index']
  #allocation1 [shape = 'u32[72,128]{1,0:T(1,128)}', space=vmem, size = 0x9000, scoped, tag = 'internal scratch']
  %s0 = inlined_call_operand.hbm [shape: f32[6], index: 0, kind: input, shape index: {}]
  %s1 = inlined_call_operand.hbm [shape: f32[3,16,128], index: 1, kind: input, shape index: {}]
  %s2 = inlined_call_operand.hbm [shape: f32[16,128], index: 2, kind: input, shape index: {}]
  %s3 = inlined_call_operand.hbm [shape: f32[16,128], index: 3, kind: output, shape index: {}]
  %s4 = sld [smem:[#allocation0]]
  $region57: #{tpu_custom_call.1} parent=0
    _
  %s6 = ssub.s32 1, %s4
  %s7 = scalar_select 0, %s6, %s4
  $region1: #{tpu_custom_call.1} parent=0
    #allocation2 [shape = 'u8[512]{0}', space=smem, size = 0x200, scoped, tag = 'input window, operand 0, single buffered']
    #allocation3 [shape = 's32[2]{0}', space=sflag, size = 0x8, scoped, tag = 'scoped memory for tpu_custom_call.1']
    #allocation4 [shape = 's32[2]{0}', space=sflag, size = 0x8, scoped, tag = 'scoped memory for tpu_custom_call.1']
    #allocation5 [shape = 's32[2]{0}', space=sflag, size = 0x8, scoped, tag = 'scoped memory for tpu_custom_call.1']
    #allocation6 [shape = 'u8[24576]{0}', space=vmem, size = 0x6000, scoped, tag = 'input window, operand 1']
    #allocation7 [shape = 'u8[8192]{0}', space=vmem, size = 0x2000, scoped, tag = 'input window, operand 2']
    #allocation8 [shape = 's32[2]{0}', space=sflag, size = 0x8, scoped, tag = 'scoped memory for tpu_custom_call.1']
    #allocation9 [shape = 'u8[8192]{0}', space=vmem, size = 0x2000, scoped, tag = 'output window, operand 0']
    %8 = vsyncpa [#allocation5], 0
    %9 = vsyncpa [#allocation3], 0
    %s10 = scalar_lea.sflag [#allocation3], 1
    %11 = vsyncpa %s10, 0
    %12 = vsyncpa [#allocation8], 0
    %s13 = scalar_lea.sflag [#allocation8], 1
    %14 = vsyncpa %s13, 0
    %15 = vsyncpa [#allocation4], 0
    %s16 = scalar_lea.sflag [#allocation4], 1
    %17 = vsyncpa %s16, 0
    loop: start=0, step=1, limit=4
    $region2: #{tpu_custom_call.1} parent=1 // loop_pre_header
      _
    $region3: #{tpu_custom_call.1} parent=1 // loop_header
      %s19 = sphi 0, %s23
      %p20 = scmp.ge.s32.totalorder %s19, 4
      %s27 = sphi 0, %s27
      %s29 = sphi 0, %s27
      %s30 = sphi 0, %s29
      %s44 = sphi 0, %s30
      %s50 = sphi 0, %s52
      %s53 = sphi 0, %s50
      %s54 = sphi 0, %s53
      %s70 = sphi 0, %s54
      %s76 = sphi 0, %s78
      %s79 = sphi 0, %s76
      %s80 = sphi 0, %s79
      %s96 = sphi 0, %s80
      %s102 = sphi 0, %s104
      %s105 = sphi 0, %s102
      %s106 = sphi 0, %s105
      %s122 = sphi 0, %s106
    $region4: #{tpu_custom_call.1} parent=1 // loop_header_branch
      %22 = sbr.rel (%p20) target = $region8
    $region5: #{tpu_custom_call.1} parent=1 // loop_body
      %s24 = ssub.s32 %s19, 1
      %s25 = ssub.s32 %s19, 2
      %s26 = sadd.s32 %s19, 1
      %s28 = sadd.s32 %s27, 1
      %p31 = scmp.eq.s32.totalorder %s19, 1
      %p32 = scmp.ne.s32.totalorder %s27, %s29
      %p33 = scmp.eq.s32.totalorder %s19, 0
      %p34 = por %p32, %p33
      %p35 = scmp.ne.s32.totalorder %s27, %s29
      %p36 = scmp.eq.s32.totalorder %s24, 1
      %p37 = por %p35, %p36
      %p38 = scmp.ne.s32.totalorder %s29, %s30
      %p39 = scmp.eq.s32.totalorder %s24, 0
      %p40 = por %p38, %p39
      %p41 = scmp.ne.s32.totalorder %s29, %s30
      %p42 = scmp.eq.s32.totalorder %s25, 1
      %p43 = por %p41, %p42
      %p45 = scmp.ne.s32.totalorder %s30, %s44
      %p46 = scmp.eq.s32.totalorder %s25, 0
      %p47 = por %p45, %p46
      %s48 = ssub.s32 %s19, %s26
      %p49 = scmp.eq.s32.totalorder %s48, 0
      %s51 = sadd.s32 %s50, 1
      %s52 = scalar_select %p49, %s50, %s51
      %p55 = pneg %p49
      %p56 = scmp.eq.s32.totalorder %s19, 1
      %p57 = por %p55, %p56
      %p58 = scmp.ne.s32.totalorder %s50, %s53
      %p59 = scmp.eq.s32.totalorder %s19, 0
      %p60 = por %p58, %p59
      %p61 = scmp.ne.s32.totalorder %s50, %s53
      %p62 = scmp.eq.s32.totalorder %s24, 1
      %p63 = por %p61, %p62
      %p64 = scmp.ne.s32.totalorder %s53, %s54
      %p65 = scmp.eq.s32.totalorder %s24, 0
      %p66 = por %p64, %p65
      %p67 = scmp.ne.s32.totalorder %s53, %s54
      %p68 = scmp.eq.s32.totalorder %s25, 1
      %p69 = por %p67, %p68
      %p71 = scmp.ne.s32.totalorder %s54, %s70
      %p72 = scmp.eq.s32.totalorder %s25, 0
      %p73 = por %p71, %p72
      %s74 = ssub.s32 %s19, %s26
      %p75 = scmp.eq.s32.totalorder %s74, 0
      %s77 = sadd.s32 %s76, 1
      %s78 = scalar_select %p75, %s76, %s77
      %p81 = pneg %p75
      %p82 = scmp.eq.s32.totalorder %s19, 1
      %p83 = por %p81, %p82
      %p84 = scmp.ne.s32.totalorder %s76, %s79
      %p85 = scmp.eq.s32.totalorder %s19, 0
      %p86 = por %p84, %p85
      %p87 = scmp.ne.s32.totalorder %s76, %s79
      %p88 = scmp.eq.s32.totalorder %s24, 1
      %p89 = por %p87, %p88
      %p90 = scmp.ne.s32.totalorder %s79, %s80
      %p91 = scmp.eq.s32.totalorder %s24, 0
      %p92 = por %p90, %p91
      %p93 = scmp.ne.s32.totalorder %s79, %s80
      %p94 = scmp.eq.s32.totalorder %s25, 1
      %p95 = por %p93, %p94
      %p97 = scmp.ne.s32.totalorder %s80, %s96
      %p98 = scmp.eq.s32.totalorder %s25, 0
      %p99 = por %p97, %p98
      %s100 = ssub.s32 %s19, %s26
      %p101 = scmp.eq.s32.totalorder %s100, 0
      %s103 = sadd.s32 %s102, 1
      %s104 = scalar_select %p101, %s102, %s103
      %p107 = pneg %p101
      %p108 = scmp.eq.s32.totalorder %s19, 1
      %p109 = por %p107, %p108
      %p110 = scmp.ne.s32.totalorder %s102, %s105
      %p111 = scmp.eq.s32.totalorder %s19, 0
      %p112 = por %p110, %p111
      %p113 = scmp.ne.s32.totalorder %s102, %s105
      %p114 = scmp.eq.s32.totalorder %s24, 1
      %p115 = por %p113, %p114
      %p116 = scmp.ne.s32.totalorder %s105, %s106
      %p117 = scmp.eq.s32.totalorder %s24, 0
      %p118 = por %p116, %p117
      %p119 = scmp.ne.s32.totalorder %s105, %s106
      %p120 = scmp.eq.s32.totalorder %s25, 1
      %p121 = por %p119, %p120
      %p123 = scmp.ne.s32.totalorder %s106, %s122
      %p124 = scmp.eq.s32.totalorder %s25, 0
      %p125 = por %p123, %p124
      %p126 = scmp.le.s32.totalorder 1, %s19
      %p127 = scmp.lt.s32.totalorder %s19, 3
      %p128 = pnand %p126, %p127
      %p129 = pneg %p128
      // Predicated region
      $region9: #{tpu_custom_call.1} parent=5 // pred_check
        _
      $region10: #{tpu_custom_call.1} parent=5 // pred_check_branch
        %131 = sbr.rel (%p128) target = $region12
      $region11: #{tpu_custom_call.1} parent=5 // pred_region
        %s132 = ssub.s32 %s19, 1
        // Predicated region
        $region13: #{tpu_custom_call.1} parent=11 // pred_check
          %p133 = pneg %p40
        $region14: #{tpu_custom_call.1} parent=11 // pred_check_branch
          %135 = sbr.rel (%p133) target = $region16
        $region15: #{tpu_custom_call.1} parent=11 // pred_region
          %137 = vsyncadd [#allocation5], 0
          %s139 = sshll.u32 %s0, 4
          %s140 = int_to_ptr.hbm [resolvable:$true] %s139
          %142 = dma.hbm_to_smem %s140, 16, [#allocation2], [#allocation5]
        $region16: #{tpu_custom_call.1} parent=11 // pred_fallthru
          _
      $region12: #{tpu_custom_call.1} parent=5 // pred_fallthru
        _
      %p143 = scmp.lt.s32.totalorder %s19, 2
      // Predicated region
      $region17: #{tpu_custom_call.1} parent=5 // pred_check
        %p144 = pneg %p143
      $region18: #{tpu_custom_call.1} parent=5 // pred_check_branch
        %146 = sbr.rel (%p144) target = $region20
      $region19: #{tpu_custom_call.1} parent=5 // pred_region
        // Predicated region
        $region21: #{tpu_custom_call.1} parent=19 // pred_check
          %p147 = pneg %p60
        $region22: #{tpu_custom_call.1} parent=19 // pred_check_branch
          %149 = sbr.rel (%p147) target = $region24
        $region23: #{tpu_custom_call.1} parent=19 // pred_region
          %s150 = sand.u32 %s50, 1
          %s151 = scalar_lea.sflag [#allocation3], %s150
          %s152 = sand.u32 %s50, 1
          %s153 = smul.addr %s152, 24
          %s154 = scalar_lea.vmem [#allocation6], %s153
          %156 = vsyncadd %s151, 0
          %s157 = smul.addr %s19, 8
          %s158 = scalar_lea.hbm %s1, %s157
          %s159 = sshll.u32 %s158, 4
          %s160 = int_to_ptr.hbm [resolvable:$true] %s159
          %s161 = sshll.u32 %s154, 4
          %s162 = int_to_ptr.vmem [resolvable:$true] %s161
          %167 = dma.hbm_to_vmem [thread:$0]  %s160, 384, %s162, %s151, 256, 128, 8
        $region24: #{tpu_custom_call.1} parent=19 // pred_fallthru
          _
        // Predicated region
        $region25: #{tpu_custom_call.1} parent=19 // pred_check
          %p168 = pneg %p86
        $region26: #{tpu_custom_call.1} parent=19 // pred_check_branch
          %170 = sbr.rel (%p168) target = $region28
        $region27: #{tpu_custom_call.1} parent=19 // pred_region
          %s171 = sand.u32 %s76, 1
          %s172 = scalar_lea.sflag [#allocation8], %s171
          %s173 = sand.u32 %s76, 1
          %s174 = smul.addr %s173, 8
          %s175 = scalar_lea.vmem [#allocation7], %s174
          %177 = vsyncadd %s172, 0
          %s178 = smul.addr %s19, 8
          %s179 = scalar_lea.hbm %s2, %s178
          %s181 = sshll.u32 %s179, 4
          %s182 = int_to_ptr.hbm [resolvable:$true] %s181
          %s183 = sshll.u32 %s175, 4
          %s184 = int_to_ptr.vmem [resolvable:$true] %s183
          %186 = dma.hbm_to_vmem [thread:$0]  %s182, 128, %s184, %s172
        $region28: #{tpu_custom_call.1} parent=19 // pred_fallthru
          _
      $region20: #{tpu_custom_call.1} parent=5 // pred_fallthru
        _
      %p187 = scmp.le.s32.totalorder 1, %s19
      %p188 = scmp.lt.s32.totalorder %s19, 3
      %p189 = pnand %p187, %p188
      %p190 = pneg %p189
      // Predicated region
      $region29: #{tpu_custom_call.1} parent=5 // pred_check
        _
      $region30: #{tpu_custom_call.1} parent=5 // pred_check_branch
        %192 = sbr.rel (%p189) target = $region32
      $region31: #{tpu_custom_call.1} parent=5 // pred_region
        %s193 = ssub.s32 %s19, 1
        // Predicated region
        $region33: #{tpu_custom_call.1} parent=31 // pred_check
          %p194 = pneg %p40
        $region34: #{tpu_custom_call.1} parent=31 // pred_check_branch
          %196 = sbr.rel (%p194) target = $region36
        $region35: #{tpu_custom_call.1} parent=31 // pred_region
          %198 = dma.done [#allocation5], 16
        $region36: #{tpu_custom_call.1} parent=31 // pred_fallthru
          _
        %s199 = sand.u32 %s53, 1
        %s200 = scalar_lea.sflag [#allocation3], %s199
        %s201 = sand.u32 %s53, 1
        %s202 = smul.addr %s201, 24
        %s203 = scalar_lea.vmem [#allocation6], %s202
        // Predicated region
        $region37: #{tpu_custom_call.1} parent=31 // pred_check
          %p204 = pneg %p66
        $region38: #{tpu_custom_call.1} parent=31 // pred_check_branch
          %206 = sbr.rel (%p204) target = $region40
        $region39: #{tpu_custom_call.1} parent=31 // pred_region
          %208 = dma.done %s200, 384
        $region40: #{tpu_custom_call.1} parent=31 // pred_fallthru
          _
        %s209 = sand.u32 %s79, 1
        %s210 = scalar_lea.sflag [#allocation8], %s209
        %s211 = sand.u32 %s79, 1
        %s212 = smul.addr %s211, 8
        %s213 = scalar_lea.vmem [#allocation7], %s212
        // Predicated region
        $region41: #{tpu_custom_call.1} parent=31 // pred_check
          %p214 = pneg %p92
        $region42: #{tpu_custom_call.1} parent=31 // pred_check_branch
          %216 = sbr.rel (%p214) target = $region44
        $region43: #{tpu_custom_call.1} parent=31 // pred_region
          %218 = dma.done %s210, 128
        $region44: #{tpu_custom_call.1} parent=31 // pred_fallthru
          _
        %219 = sfence
        %p220 = pneg %p40
        %p221 = pneg %p37
        %s222 = sand.u32 %s53, 1
        %s223 = scalar_lea.sflag [#allocation3], %s222
        %s224 = sand.u32 %s53, 1
        %s225 = smul.addr %s224, 24
        %s226 = scalar_lea.vmem [#allocation6], %s225
        %p227 = pneg %p66
        %p228 = pneg %p63
        %s229 = sand.u32 %s79, 1
        %s230 = scalar_lea.sflag [#allocation8], %s229
        %s231 = sand.u32 %s79, 1
        %s232 = smul.addr %s231, 8
        %s233 = scalar_lea.vmem [#allocation7], %s232
        %p234 = pneg %p92
        %p235 = pneg %p89
        %p236 = pneg %p118
        %p237 = pneg %p115
        %s238 = sand.u32 %s105, 1
        %s239 = scalar_lea.sflag [#allocation4], %s238
        %s240 = sand.u32 %s105, 1
        %s241 = smul.addr %s240, 8
        %s242 = scalar_lea.vmem [#allocation9], %s241
        %s243 = sld [smem:[#allocation2]]
        %s244 = sld [smem:[#allocation2 + $0x1]]
        %s245 = sld [smem:[#allocation2 + $0x2]]
        %s246 = sld [smem:[#allocation2 + $0x4]]
        %s247 = sld [smem:[#allocation2 + $0x5]]
        %v248 = vld [vmem:[%s203] sm:$0xff]
        %v249 = vstv %s243
        %v250 = vsub.f32 %v248, %v249
        %s251 = scalar_lea.vmem %s203, 8 [#allocation6]
        %v252 = vld [vmem:[%s251] sm:$0xff]
        %v253 = vstv %s244
        %v254 = vsub.f32 %v252, %v253
        %s255 = scalar_lea.vmem %s203, 16 [#allocation6]
        %v256 = vld [vmem:[%s255] sm:$0xff]
        %v257 = vstv %s245
        %v258 = vsub.f32 %v256, %v257
        %s259 = sld [smem:[#allocation2 + $0x3]]
        %v260 = vmul.f32 %v250, %v250
        %v261 = vmul.f32 %v254, %v254
        %v262 = vadd.f32 %v260, %v261
        %v263 = vmul.f32 %v258, %v258
        %v264 = vadd.f32 %v262, %v263
        %v265 = vrsqrt.pop %v264
        %v266 = vmul.f32 %v265, %v264
        %v267 = vmul.f32 %v266, %v265
        %v268 = vmul.f32 0.5, %v267
        %v269 = vsub.f32 1.5, %v268
        %v270 = vmul.f32 %v265, %v269
        %v271 = vmul.f32 %v264, %v270
        %vm272 = vcmp.eq.f32.partialorder %v264, inf
        %v273 = vsel %vm272, %v264, %v271
        %vm274 = vcmp.eq.f32.partialorder %v264, 0.0
        %v275 = vand.u32 %v264, 2147483648
        %v276 = vsel %vm274, %v275, %v273
        %v277 = vstv %s259
        %v278 = vsub.f32 %v276, %v277
        %v279 = vand.u32 2147483647, %v278
        %v280 = vsub.f32 0.0, %v279
        %v281 = vstv %s247
        %v282 = vmul.f32 %v280, %v281
        %v283 = vmul.f32 %v282, 1.442695
        %v284 = vpow.pop %v283
        %vm285 = vcmp.gt.f32.partialorder %v278, 0.0
        %v286 = vmul.f32 %v284, 0.5
        %v287 = vsub.f32 1.0, %v286
        %v288 = vsel %vm285, %v286, %v287
        %v289 = vstv %s246
        %v290 = vmul.f32 %v288, %v289
        %v291 = vsub.f32 1.0, %v290
        %v292 = vlog2.pop %v291
        %v293 = vmul.f32 %v292, 0.6931472
        %v294 = vsub.f32 0.0, %v293
        %v295 = vld [vmem:[%s213] sm:$0xff]
        %v296 = vmul.f32 %v294, %v295
        %297 = vst [vmem:[%s242] sm:$0xff] %v296
        %s298 = sand.u32 %s105, 1
        %s299 = scalar_lea.sflag [#allocation4], %s298
        %s300 = sand.u32 %s105, 1
        %s301 = smul.addr %s300, 8
        %s302 = scalar_lea.vmem [#allocation9], %s301
        // Predicated region
        $region45: #{tpu_custom_call.1} parent=31 // pred_check
          %p303 = pneg %p115
        $region46: #{tpu_custom_call.1} parent=31 // pred_check_branch
          %305 = sbr.rel (%p303) target = $region48
        $region47: #{tpu_custom_call.1} parent=31 // pred_region
          %307 = vsyncadd %s299, 0
          %s308 = smul.addr %s24, 8
          %s309 = scalar_lea.hbm %s3, %s308
          %s311 = sshll.u32 %s302, 4
          %s312 = int_to_ptr.vmem [resolvable:$true] %s311
          %s313 = sshll.u32 %s309, 4
          %s314 = int_to_ptr.hbm [resolvable:$true] %s313
          %316 = dma.vmem_to_hbm [thread:$0]  %s312, 128, %s314, %s299
        $region48: #{tpu_custom_call.1} parent=31 // pred_fallthru
          _
      $region32: #{tpu_custom_call.1} parent=5 // pred_fallthru
        _
      %p317 = scmp.le.s32.totalorder 2, %s19
      // Predicated region
      $region49: #{tpu_custom_call.1} parent=5 // pred_check
        %p318 = pneg %p317
      $region50: #{tpu_custom_call.1} parent=5 // pred_check_branch
        %320 = sbr.rel (%p318) target = $region52
      $region51: #{tpu_custom_call.1} parent=5 // pred_region
        %s321 = ssub.s32 %s19, 2
        // Predicated region
        $region53: #{tpu_custom_call.1} parent=51 // pred_check
          %p322 = pneg %p121
        $region54: #{tpu_custom_call.1} parent=51 // pred_check_branch
          %324 = sbr.rel (%p322) target = $region56
        $region55: #{tpu_custom_call.1} parent=51 // pred_region
          %s325 = sand.u32 %s106, 1
          %s326 = scalar_lea.sflag [#allocation4], %s325
          %s327 = sand.u32 %s106, 1
          %s328 = smul.addr %s327, 8
          %s329 = scalar_lea.vmem [#allocation9], %s328
          %331 = dma.done %s326, 128
        $region56: #{tpu_custom_call.1} parent=51 // pred_fallthru
          _
      $region52: #{tpu_custom_call.1} parent=5 // pred_fallthru
        _
    $region6: #{tpu_custom_call.1} parent=1 // loop_footer
      %s23 = sadd.s32 1, %s19
    $region7: #{tpu_custom_call.1} parent=1 // loop_footer_branch
      %18 = sbr.rel target = $region3
    $region8: #{tpu_custom_call.1} parent=1 // loop_exit
      _
    %332 = vsyncpa [#allocation3], 1
    %s333 = scalar_lea.sflag [#allocation3], 1
    %334 = vsyncpa %s333, 1
    %335 = vsyncpa [#allocation8], 1
    %s336 = scalar_lea.sflag [#allocation8], 1
    %337 = vsyncpa %s336, 1
    %338 = vsyncpa [#allocation4], 1
    %s339 = scalar_lea.sflag [#allocation4], 1
    %340 = vsyncpa %s339, 1
    %341 = vsyncpa [#allocation5], 1
    %s342 = scalar_lea.sflag [#allocation5], 1
    %343 = vsyncpa %s342, 1

</llo_original>
